<compile_context>
chip_gen: v7x
topology: tpu7x:2x2x1
jax: 0.10.0
libtpu: 0.0.40
codegen_flags: <defaults>
</compile_context>

<pallas_src>
import functools
import math

import jax
import jax.numpy as jnp
from jax.experimental import pallas as pl
from jax.experimental.pallas import tpu as pltpu


# ---------------------------------------------------------------------------
# GELU (GPT-2 tanh approximation) — used inside the kernel epilogue.
# ---------------------------------------------------------------------------
def _gelu(x):
    return 0.5 * x * (1.0 + jnp.tanh(
        math.sqrt(2.0 / math.pi) * (x + 0.044715 * x * x * x)))


# ---------------------------------------------------------------------------
# Pallas kernel: (optional LN) -> Linear + LoRA -> (optional GELU / residual)
# with K/N tiling and f32 accumulation.
# ---------------------------------------------------------------------------
def _lora_linear_kernel(*refs, scale, activation, fuse_ln, fuse_residual,
                        ln_eps):
    it = iter(refs)
    x_ref = next(it)           # (tm, tk)  bf16 (or f32 when fuse_ln)
    w_ref = next(it)           # (tk, tn)  bf16 frozen weight tile
    b_ref = next(it)           # (1, tn)   f32 bias tile
    a_ref = next(it)           # (tk, r)   bf16 LoRA A tile
    bm_ref = next(it)          # (r, tn)   bf16 LoRA B tile
    if fuse_ln:
        g_ref = next(it)       # (1, tk)   f32 LN gamma (tk == d_in)
        bt_ref = next(it)      # (1, tk)   f32 LN beta
    if fuse_residual:
        r_ref = next(it)       # (tm, tn)  f32 residual tile
    o_ref = next(it)           # (tm, tn)  output tile
    acc_ref = next(it)         # (tm, tn)  f32 main accumulator
    xa_ref = next(it)          # (tm, r)   f32 x@A accumulator

    k = pl.program_id(2)

    @pl.when(k == 0)
    def _init():
        acc_ref[...] = jnp.zeros_like(acc_ref)
        xa_ref[...] = jnp.zeros_like(xa_ref)

    x = x_ref[...]
    if fuse_ln:
        # LayerNorm prologue in f32 (only valid when tk == d_in, i.e. no K
        # tiling).  VPU/EUP work, essentially free next to the MXU matmul.
        xf = x.astype(jnp.float32)
        mu = jnp.mean(xf, axis=-1, keepdims=True)
        var = jnp.mean(jnp.square(xf - mu), axis=-1, keepdims=True)
        xn = (xf - mu) * jax.lax.rsqrt(var + ln_eps)
        x = (xn * g_ref[...] + bt_ref[...]).astype(jnp.bfloat16)

    # Frozen linear partial: acc += x @ W_tile   (f32 accumulation on MXU).
    acc_ref[...] += jnp.dot(x, w_ref[...], preferred_element_type=jnp.float32)
    # LoRA left factor partial: xa += x @ A_tile (tiny: rank columns).
    xa_ref[...] += jnp.dot(x, a_ref[...], preferred_element_type=jnp.float32)

    @pl.when(k == pl.num_programs(2) - 1)
    def _finalize():
        # LoRA right factor on the (tm, rank) intermediate — the scale hits
        # only the small tile, never a (d_in, d_out) tensor.
        lora = jnp.dot((xa_ref[...] * scale).astype(jnp.bfloat16), bm_ref[...],
                       preferred_element_type=jnp.float32)
        z = acc_ref[...] + lora + b_ref[...]
        if activation == "gelu":          # fused epilogue (EUP/VPU slots)
            z = _gelu(z)
        if fuse_residual:                 # fused residual add
            z = z + r_ref[...]
        o_ref[...] = z.astype(o_ref.dtype)


def _pick_k_tile(d_in, target):
    """Pick a K tile that evenly divides d_in (avoids ragged-K contamination)."""
    if d_in <= target:
        return d_in
    t = (target // 128) * 128
    while t >= 128:
        if d_in % t == 0:
            return t
        t -= 128
    return d_in  # fallback: no K tiling (full dim is always a legal block)


def lora_linear(x, w, b, A, B, *, scale, activation="none",
                ln_params=None, residual=None,
                tm=256, tn=512, tk=512, out_dtype=jnp.float32):
    """Fused (LayerNorm) -> x @ w + b + ((x @ A) * scale) @ B -> (GELU/residual).

    x: (M, d_in); w: (d_in, d_out); b: (d_out,); A: (d_in, r); B: (r, d_out).
    ln_params: optional (gamma, beta) — LayerNorm fused as a prologue
               (requires no K tiling; tk is forced to d_in).
    residual:  optional (M, d_out) tensor added in the epilogue.
    """
    M, d_in = x.shape
    d_out = w.shape[1]
    rank = A.shape[1]
    fuse_ln = ln_params is not None
    fuse_residual = residual is not None

    # Pad LoRA rank to a multiple of 8 (zero rows/cols: identical math,
    # clean sublane layout for the rank-sized matmuls).
    rank_p = max(8, -(-rank // 8) * 8)
    if rank_p != rank:
        A = jnp.pad(A, ((0, 0), (0, rank_p - rank)))
        B = jnp.pad(B, ((0, rank_p - rank), (0, 0)))

    # Row tile: multiple of 8 (or full M when M is not 8-aligned, which is a
    # legal "full dim" block).
    tm = min(tm, M) if M % 8 == 0 else M
    tn = min(tn, d_out)
    if fuse_ln:
        tk = d_in                       # LN needs the full row: no K tiling
        xk = x.astype(jnp.float32)      # LN statistics computed in f32
    else:
        tk = _pick_k_tile(d_in, tk)
        xk = x.astype(jnp.bfloat16)

    wb = w.astype(jnp.bfloat16)
    Ab = A.astype(jnp.bfloat16)
    Bb = B.astype(jnp.bfloat16)
    b2 = b.reshape(1, d_out).astype(jnp.float32)

    grid = (pl.cdiv(M, tm), pl.cdiv(d_out, tn), d_in // tk)

    in_specs = [
        pl.BlockSpec((tm, tk), lambda i, j, k: (i, k)),       # activations
        pl.BlockSpec((tk, tn), lambda i, j, k: (k, j)),       # frozen W tile
        pl.BlockSpec((1, tn), lambda i, j, k: (0, j)),        # bias tile
        pl.BlockSpec((tk, rank_p), lambda i, j, k: (k, 0)),   # LoRA A tile
        pl.BlockSpec((rank_p, tn), lambda i, j, k: (0, j)),   # LoRA B tile
    ]
    args = [xk, wb, b2, Ab, Bb]
    if fuse_ln:
        g, beta = ln_params
        in_specs += [pl.BlockSpec((1, tk), lambda i, j, k: (0, k)),
                     pl.BlockSpec((1, tk), lambda i, j, k: (0, k))]
        args += [g.reshape(1, d_in).astype(jnp.float32),
                 beta.reshape(1, d_in).astype(jnp.float32)]
    if fuse_residual:
        in_specs.append(pl.BlockSpec((tm, tn), lambda i, j, k: (i, j)))
        args.append(residual.astype(jnp.float32))

    kernel = functools.partial(
        _lora_linear_kernel, scale=float(scale), activation=activation,
        fuse_ln=fuse_ln, fuse_residual=fuse_residual, ln_eps=1e-5)

    return pl.pallas_call(
        kernel,
        out_shape=jax.ShapeDtypeStruct((M, d_out), out_dtype),
        grid=grid,
        in_specs=in_specs,
        out_specs=pl.BlockSpec((tm, tn), lambda i, j, k: (i, j)),
        scratch_shapes=[
            pltpu.VMEM((tm, tn), jnp.float32),      # main accumulator
            pltpu.VMEM((tm, rank_p), jnp.float32),  # x @ A accumulator
        ],
        compiler_params=pltpu.CompilerParams(
            dimension_semantics=("parallel", "parallel", "arbitrary"),
            vmem_limit_bytes=32 * 1024 * 1024),
    )(*args)


# ---------------------------------------------------------------------------
# GPT-with-LoRA forward (embeddings / attention core / reshapes in plain JAX)
# ---------------------------------------------------------------------------
def gpt_with_lora_forward(params, inputs, *, cfg, alpha, rank, is_logits=True):
    assert inputs.ndim == 2, "inputs rank must be 2 and inputs.shape = (b, T)"
    Bsz, T = inputs.shape
    D = cfg["emb_dim"]
    H = cfg["n_heads"]
    hd = D // H
    M = Bsz * T
    s = float(alpha) / float(rank)

    x = params["wte"][inputs] + params["wpe"][:T][None, :, :]   # (B, T, D)
    # Dropout (drop_rate) is identity at inference.

    for blk in params["blocks"]:
        # --- attention sub-block: LN1 fused into qkv prologue,
        #     residual fused into the out-proj epilogue ---
        flat = x.reshape(M, D)                                   # pre-LN stream
        qkv = lora_linear(flat, **blk["attn"]["wqkv"], scale=s,
                          ln_params=(blk["ln1_g"], blk["ln1_b"]))  # (M, 3D)
        q, k, v = jnp.split(qkv, 3, axis=-1)

        def heads(t):
            return t.reshape(Bsz, T, H, hd).transpose(0, 2, 1, 3)  # (B,H,T,hd)

        q, k, v = heads(q), heads(k), heads(v)
        # TODO(synk): replace with a flash-attention-style Pallas kernel
        # (online softmax, tq/tk tiles) for non-trivial context lengths.
        scores = jnp.einsum("bhqd,bhkd->bhqk", q, k) / math.sqrt(hd)
        causal = jnp.tril(jnp.ones((T, T), dtype=bool))
        scores = jnp.where(causal[None, None], scores, -jnp.inf)
        attn = jax.nn.softmax(scores, axis=-1)
        ctx = jnp.einsum("bhqk,bhkd->bhqd", attn, v)
        ctx = ctx.transpose(0, 2, 1, 3).reshape(M, D)

        x = lora_linear(ctx, **blk["attn"]["wo"], scale=s,
                        residual=flat).reshape(Bsz, T, D)

        # --- MLP sub-block: LN2 + GELU fused into fc, residual fused into proj
        flat = x.reshape(M, D)
        h1 = lora_linear(flat, **blk["ff"]["w1"], scale=s, activation="gelu",
                         ln_params=(blk["ln2_g"], blk["ln2_b"]))
        x = lora_linear(h1, **blk["ff"]["w2"], scale=s,
                        residual=flat).reshape(Bsz, T, D)

    # final LayerNorm fused into the lm-head prologue (bias-free head)
    flat = x.reshape(M, D)
    logits = lora_linear(flat, **params["head"], scale=s,
                         ln_params=(params["lnf_g"], params["lnf_b"]))
    # TODO(synk): GPTModel's `is_logits=False` branch is unspecified; only
    # logits are returned.
    return logits.reshape(Bsz, T, cfg["vocab_size"])


# ---------------------------------------------------------------------------
# Deterministic parameter construction (weights stored bf16, LN/bias in f32)
# ---------------------------------------------------------------------------
def init_params(key, cfg, rank):
    D, V, C = cfg["emb_dim"], cfg["vocab_size"], cfg["context_length"]
    Dff = 4 * D

    keys = iter(jax.random.split(key, 256))

    def nrm(shape, std=0.02, dtype=jnp.float32):
        return (std * jax.random.normal(next(keys), shape)).astype(dtype)

    def lora_lin(d_in, d_out, with_bias=True):
        return {
            "w": nrm((d_in, d_out), dtype=jnp.bfloat16),
            "b": nrm((d_out,)) if with_bias else jnp.zeros((d_out,), jnp.float32),
            "A": nrm((d_in, rank), std=0.01, dtype=jnp.bfloat16),
            # NOTE: torch init sets B = zeros; a small nonzero init is used so
            # the LoRA branch of the kernel is numerically exercised.
            "B": nrm((rank, d_out), std=0.01, dtype=jnp.bfloat16),
        }

    def fused_qkv():
        q, k, v = lora_lin(D, D), lora_lin(D, D), lora_lin(D, D)
        # block-diagonal LoRA-B so (x@A_cat)@B_cat == concat of per-proj LoRAs
        Bcat = jnp.zeros((3 * rank, 3 * D), jnp.bfloat16)
        Bcat = Bcat.at[:rank, :D].set(q["B"])
        Bcat = Bcat.at[rank:2 * rank, D:2 * D].set(k["B"])
        Bcat = Bcat.at[2 * rank:, 2 * D:].set(v["B"])
        return {
            "w": jnp.concatenate([q["w"], k["w"], v["w"]], axis=1),   # (D, 3D)
            "b": jnp.concatenate([q["b"], k["b"], v["b"]]),           # (3D,)
            "A": jnp.concatenate([q["A"], k["A"], v["A"]], axis=1),   # (D, 3r)
            "B": Bcat,                                                # (3r, 3D)
        }

    blocks = []
    for _ in range(cfg["n_layers"]):
        blocks.append({
            "ln1_g": jnp.ones((D,), jnp.float32),
            "ln1_b": jnp.zeros((D,), jnp.float32),
            "attn": {"wqkv": fused_qkv(), "wo": lora_lin(D, D)},
            "ln2_g": jnp.ones((D,), jnp.float32),
            "ln2_b": jnp.zeros((D,), jnp.float32),
            "ff": {"w1": lora_lin(D, Dff), "w2": lora_lin(Dff, D)},
        })

    return {
        "wte": nrm((V, D)),
        "wpe": nrm((C, D)),
        "blocks": blocks,
        "lnf_g": jnp.ones((D,), jnp.float32),
        "lnf_b": jnp.zeros((D,), jnp.float32),
        "head": lora_lin(D, V, with_bias=False),   # out_head has no bias
    }


# ---------------------------------------------------------------------------
if __name__ == "__main__":
    cfg = {
        "vocab_size": 97,
        "context_length": 16,
        "emb_dim": 32,
        "n_heads": 4,
        "n_layers": 2,
        "drop_rate": 0.0,   # inference: dropout is identity
        "qkv_bias": True,
    }
    lora_rank = 4
    lora_alpha = 8.0

    key = jax.random.PRNGKey(0)
    pkey, ikey, ckey = jax.random.split(key, 3)

    # --- standalone sanity check of the fused LoRA-linear kernel ------------
    c = jax.random.split(ckey, 5)
    xs = jax.random.normal(c[0], (16, 32), jnp.float32)
    ws = 0.05 * jax.random.normal(c[1], (32, 64), jnp.float32)
    bs = 0.05 * jax.random.normal(c[2], (64,), jnp.float32)
    As = 0.05 * jax.random.normal(c[3], (32, 4), jnp.float32)
    Bs = 0.05 * jax.random.normal(c[4], (4, 64), jnp.float32)
    got = jax.block_until_ready(lora_linear(xs, ws, bs, As, Bs, scale=2.0))
    xb, wb, Ab, Bb = (t.astype(jnp.bfloat16) for t in (xs, ws, As, Bs))
    xa = jnp.dot(xb, Ab, preferred_element_type=jnp.float32)
    ref = (jnp.dot(xb, wb, preferred_element_type=jnp.float32) + bs[None, :]
           + jnp.dot((xa * 2.0).astype(jnp.bfloat16), Bb,
                     preferred_element_type=jnp.float32))
    assert jnp.allclose(got, ref, atol=5e-2, rtol=5e-2), "LoRA-linear mismatch"

    # --- full forward pass ---------------------------------------------------
    params = init_params(pkey, cfg, lora_rank)
    batch, seq = 2, 8
    inputs = jax.random.randint(ikey, (batch, seq), 0, cfg["vocab_size"],
                                dtype=jnp.int32)

    logits = gpt_with_lora_forward(params, inputs, cfg=cfg,
                                   alpha=lora_alpha, rank=lora_rank,
                                   is_logits=True)
    logits = jax.block_until_ready(logits)

    assert logits.shape == (batch, seq, cfg["vocab_size"])
    assert jnp.all(jnp.isfinite(logits))
    print("KERNEL_OK")
</pallas_src>

<mosaic_0001>
module attributes {stable_mosaic.version = 11 : i64} {
  func.func @_lora_linear_kernel(%arg0: i32, %arg1: i32, %arg2: i32, %arg3: memref<16x32xbf16, #tpu.memory_space<vmem>>, %arg4: memref<32x64xbf16, #tpu.memory_space<vmem>>, %arg5: memref<1x64xf32, #tpu.memory_space<vmem>>, %arg6: memref<32x8xbf16, #tpu.memory_space<vmem>>, %arg7: memref<8x64xbf16, #tpu.memory_space<vmem>>, %arg8: memref<16x64xf32, #tpu.memory_space<vmem>>, %arg9: memref<16x64xf32, #tpu.memory_space<vmem>>, %arg10: memref<16x8xf32, #tpu.memory_space<vmem>>) attributes {dimension_semantics = [#tpu.dimension_semantics<parallel>, #tpu.dimension_semantics<parallel>, #tpu.dimension_semantics<arbitrary>], iteration_bounds = array<i64: 1, 1, 1>, scalar_prefetch = 0 : i64, scratch_operands = 2 : i64, tpu.core_type = #tpu.core_type<tc>, window_params = [{transform_indices = @transform_0, window_bounds = array<i64: 16, 32>}, {transform_indices = @transform_1, window_bounds = array<i64: 32, 64>}, {transform_indices = @transform_2, window_bounds = array<i64: 1, 64>}, {transform_indices = @transform_3, window_bounds = array<i64: 32, 8>}, {transform_indices = @transform_4, window_bounds = array<i64: 8, 64>}, {transform_indices = @transform_5, window_bounds = array<i64: 16, 64>}]} {
    %c0_i32 = arith.constant 0 : i32
    %0 = arith.cmpi eq, %arg2, %c0_i32 : i32
    %1 = arith.extui %0 : i1 to i32
    %c0_i32_0 = arith.constant 0 : i32
    %2 = arith.cmpi ne, %1, %c0_i32_0 : i32
    scf.if %2 {
      %cst_17 = arith.constant 0.000000e+00 : f32
      %17 = vector.broadcast %cst_17 : f32 to vector<16x64xf32>
      %c0_18 = arith.constant 0 : index
      %c0_19 = arith.constant 0 : index
      %18 = vector.load %arg9[%c0_18, %c0_19] : memref<16x64xf32, #tpu.memory_space<vmem>>, vector<16x64xf32>
      tpu.vector_store %arg9[%c0_18, %c0_19], %17 {strides = array<i32>} : memref<16x64xf32, #tpu.memory_space<vmem>>, vector<16x64xf32>,
      %cst_20 = arith.constant 0.000000e+00 : f32
      %19 = vector.broadcast %cst_20 : f32 to vector<16x8xf32>
      %c0_21 = arith.constant 0 : index
      %c0_22 = arith.constant 0 : index
      %20 = vector.load %arg10[%c0_21, %c0_22] : memref<16x8xf32, #tpu.memory_space<vmem>>, vector<16x8xf32>
      tpu.vector_store %arg10[%c0_21, %c0_22], %19 {strides = array<i32>} : memref<16x8xf32, #tpu.memory_space<vmem>>, vector<16x8xf32>,
    } else {
    }
    %c0 = arith.constant 0 : index
    %c0_1 = arith.constant 0 : index
    %3 = vector.load %arg3[%c0, %c0_1] : memref<16x32xbf16, #tpu.memory_space<vmem>>, vector<16x32xbf16>
    %c0_2 = arith.constant 0 : index
    %c0_3 = arith.constant 0 : index
    %4 = vector.load %arg9[%c0_2, %c0_3] : memref<16x64xf32, #tpu.memory_space<vmem>>, vector<16x64xf32>
    %c0_4 = arith.constant 0 : index
    %c0_5 = arith.constant 0 : index
    %5 = vector.load %arg4[%c0_4, %c0_5] : memref<32x64xbf16, #tpu.memory_space<vmem>>, vector<32x64xbf16>
    %cst = arith.constant dense<0.000000e+00> : vector<16x64xf32>
    %6 = tpu.matmul %3, %5, %cst {dimension_numbers = #tpu.dot_dimension_numbers<[1], [0], [0], [1], [0, 0, 1, 1], [], []>} : vector<16x32xbf16>, vector<32x64xbf16>, vector<16x64xf32> -> vector<16x64xf32>
    %7 = arith.addf %4, %6 : vector<16x64xf32>
    %c0_6 = arith.constant 0 : index
    %c0_7 = arith.constant 0 : index
    %8 = vector.load %arg9[%c0_6, %c0_7] : memref<16x64xf32, #tpu.memory_space<vmem>>, vector<16x64xf32>
    tpu.vector_store %arg9[%c0_6, %c0_7], %7 {strides = array<i32>} : memref<16x64xf32, #tpu.memory_space<vmem>>, vector<16x64xf32>,
    %c0_8 = arith.constant 0 : index
    %c0_9 = arith.constant 0 : index
    %9 = vector.load %arg10[%c0_8, %c0_9] : memref<16x8xf32, #tpu.memory_space<vmem>>, vector<16x8xf32>
    %c0_10 = arith.constant 0 : index
    %c0_11 = arith.constant 0 : index
    %10 = vector.load %arg6[%c0_10, %c0_11] : memref<32x8xbf16, #tpu.memory_space<vmem>>, vector<32x8xbf16>
    %cst_12 = arith.constant dense<0.000000e+00> : vector<16x8xf32>
    %11 = tpu.matmul %3, %10, %cst_12 {dimension_numbers = #tpu.dot_dimension_numbers<[1], [0], [0], [1], [0, 0, 1, 1], [], []>} : vector<16x32xbf16>, vector<32x8xbf16>, vector<16x8xf32> -> vector<16x8xf32>
    %12 = arith.addf %9, %11 : vector<16x8xf32>
    %c0_13 = arith.constant 0 : index
    %c0_14 = arith.constant 0 : index
    %13 = vector.load %arg10[%c0_13, %c0_14] : memref<16x8xf32, #tpu.memory_space<vmem>>, vector<16x8xf32>
    tpu.vector_store %arg10[%c0_13, %c0_14], %12 {strides = array<i32>} : memref<16x8xf32, #tpu.memory_space<vmem>>, vector<16x8xf32>,
    %c0_i32_15 = arith.constant 0 : i32
    %14 = arith.cmpi eq, %arg2, %c0_i32_15 : i32
    %15 = arith.extui %14 : i1 to i32
    %c0_i32_16 = arith.constant 0 : i32
    %16 = arith.cmpi ne, %15, %c0_i32_16 : i32
    scf.if %16 {
      %c0_17 = arith.constant 0 : index
      %c0_18 = arith.constant 0 : index
      %17 = vector.load %arg10[%c0_17, %c0_18] : memref<16x8xf32, #tpu.memory_space<vmem>>, vector<16x8xf32>
      %cst_19 = arith.constant 2.000000e+00 : f32
      %18 = vector.broadcast %cst_19 : f32 to vector<16x8xf32>
      %19 = arith.mulf %17, %18 : vector<16x8xf32>
      %20 = arith.truncf %19 : vector<16x8xf32> to vector<16x8xbf16>
      %c0_20 = arith.constant 0 : index
      %c0_21 = arith.constant 0 : index
      %21 = vector.load %arg7[%c0_20, %c0_21] : memref<8x64xbf16, #tpu.memory_space<vmem>>, vector<8x64xbf16>
      %cst_22 = arith.constant dense<0.000000e+00> : vector<16x64xf32>
      %22 = tpu.matmul %20, %21, %cst_22 {dimension_numbers = #tpu.dot_dimension_numbers<[1], [0], [0], [1], [0, 0, 1, 1], [], []>} : vector<16x8xbf16>, vector<8x64xbf16>, vector<16x64xf32> -> vector<16x64xf32>
      %c0_23 = arith.constant 0 : index
      %c0_24 = arith.constant 0 : index
      %23 = vector.load %arg9[%c0_23, %c0_24] : memref<16x64xf32, #tpu.memory_space<vmem>>, vector<16x64xf32>
      %24 = arith.addf %23, %22 : vector<16x64xf32>
      %c0_25 = arith.constant 0 : index
      %c0_26 = arith.constant 0 : index
      %25 = vector.load %arg5[%c0_25, %c0_26] : memref<1x64xf32, #tpu.memory_space<vmem>>, vector<1x64xf32>
      %26 = vector.broadcast %25 : vector<1x64xf32> to vector<16x64xf32>
      %27 = arith.addf %24, %26 : vector<16x64xf32>
      %c0_27 = arith.constant 0 : index
      %c0_28 = arith.constant 0 : index
      %28 = vector.load %arg8[%c0_27, %c0_28] : memref<16x64xf32, #tpu.memory_space<vmem>>, vector<16x64xf32>
      tpu.vector_store %arg8[%c0_27, %c0_28], %27 {strides = array<i32>} : memref<16x64xf32, #tpu.memory_space<vmem>>, vector<16x64xf32>,
    } else {
    }
    return
  }
  func.func @transform_0(%arg0: i32, %arg1: i32, %arg2: i32) -> (i32, i32) {
    %c0_i32 = arith.constant 0 : i32
    return %arg0, %arg2 : i32, i32
  }
  func.func @transform_1(%arg0: i32, %arg1: i32, %arg2: i32) -> (i32, i32) {
    %c0_i32 = arith.constant 0 : i32
    return %arg2, %arg1 : i32, i32
  }
  func.func @transform_2(%arg0: i32, %arg1: i32, %arg2: i32) -> (i32, i32) {
    %c0_i32 = arith.constant 0 : i32
    %c0_i32_0 = arith.constant 0 : i32
    return %c0_i32, %arg1 : i32, i32
  }
  func.func @transform_3(%arg0: i32, %arg1: i32, %arg2: i32) -> (i32, i32) {
    %c0_i32 = arith.constant 0 : i32
    %c0_i32_0 = arith.constant 0 : i32
    return %arg2, %c0_i32 : i32, i32
  }
  func.func @transform_4(%arg0: i32, %arg1: i32, %arg2: i32) -> (i32, i32) {
    %c0_i32 = arith.constant 0 : i32
    %c0_i32_0 = arith.constant 0 : i32
    return %c0_i32, %arg1 : i32, i32
  }
  func.func @transform_5(%arg0: i32, %arg1: i32, %arg2: i32) -> (i32, i32) {
    %c0_i32 = arith.constant 0 : i32
    return %arg0, %arg1 : i32, i32
  }
}

</mosaic_0001>

<llo_original>
// kernel: tpu_custom_call.1
$region0: #{tpu_custom_call.1}
  #allocation0 [shape = 'u32[]', space=smem, size = 0x4, offset = 0x4, fixed_abs, tag = 'smem constant byte address 0x4 - core index']
  #allocation1 [shape = 'u32[144,128]{1,0:T(1,128)}', space=vmem, size = 0x12000, scoped, tag = 'internal scratch']
  #allocation2 [shape = 'f32[16,64]{1,0:T(8,128)}', space=vmem, size = 0x2000, scoped, tag = 'scratch operand']
  #allocation3 [shape = 'f32[16,8]{1,0:T(8,128)}', space=vmem, size = 0x2000, scoped, tag = 'scratch operand']
  %s0 = inlined_call_operand.hbm [shape: bf16[16,32], index: 0, kind: input, shape index: {}]
  %s1 = inlined_call_operand.vmem [shape: bf16[32,64], index: 1, kind: input, shape index: {}]
  %s2 = inlined_call_operand.vmem [shape: f32[1,64], index: 2, kind: input, shape index: {}]
  %s3 = inlined_call_operand.vmem [shape: bf16[32,8], index: 3, kind: input, shape index: {}]
  %s4 = inlined_call_operand.vmem [shape: bf16[8,64], index: 4, kind: input, shape index: {}]
  %s5 = inlined_call_operand.hbm [shape: f32[16,64], index: 5, kind: output, shape index: {}]
  %s6 = sld [smem:[#allocation0]]
  $region42: #{tpu_custom_call.1} parent=0
    _
  %s8 = ssub.s32 1, %s6
  %s9 = scalar_select 0, %s8, %s6
  $region1: #{tpu_custom_call.1} parent=0
    #allocation4 [shape = 'u8[4096]{0}', space=vmem, size = 0x1000, scoped, tag = 'input window, operand 0, single buffered']
    #allocation5 [shape = 's32[1]{0}', space=sflag, size = 0x4, scoped, tag = 'scoped memory for tpu_custom_call.1']
    #allocation6 [shape = 's32[1]{0}', space=sflag, size = 0x4, scoped, tag = 'scoped memory for tpu_custom_call.1']
    #allocation7 [shape = 'u8[8192]{0}', space=vmem, size = 0x2000, scoped, tag = 'output window, operand 0, single buffered']
    %10 = vsyncpa [#allocation5], 0
    %11 = vsyncpa [#allocation6], 0
    // Predicated region
    $region2: #{tpu_custom_call.1} parent=1 // pred_check
      _
    $region3: #{tpu_custom_call.1} parent=1 // pred_check_branch
      %13 = sbr.rel (0) target = $region5
    $region4: #{tpu_custom_call.1} parent=1 // pred_region
      %s15 = ssub.s32 128, 128
      %16 = vsyncadd [#allocation5], %s15
      %s17 = sshll.u32 [#allocation4], 4
      %s18 = int_to_ptr.vmem [resolvable:$true] %s17
      %23 = dma.hbm_to_vmem [thread:$0]  %s0, 128, %s18, [#allocation5], 64, 64, 4
    $region5: #{tpu_custom_call.1} parent=1 // pred_fallthru
      _
    // Predicated region
    $region6: #{tpu_custom_call.1} parent=1 // pred_check
      _
    $region7: #{tpu_custom_call.1} parent=1 // pred_check_branch
      %25 = sbr.rel (0) target = $region9
    $region8: #{tpu_custom_call.1} parent=1 // pred_region
      _
    $region9: #{tpu_custom_call.1} parent=1 // pred_fallthru
      _
    // Predicated region
    $region10: #{tpu_custom_call.1} parent=1 // pred_check
      _
    $region11: #{tpu_custom_call.1} parent=1 // pred_check_branch
      %27 = sbr.rel (0) target = $region13
    $region12: #{tpu_custom_call.1} parent=1 // pred_region
      _
    $region13: #{tpu_custom_call.1} parent=1 // pred_fallthru
      _
    // Predicated region
    $region14: #{tpu_custom_call.1} parent=1 // pred_check
      _
    $region15: #{tpu_custom_call.1} parent=1 // pred_check_branch
      %29 = sbr.rel (0) target = $region17
    $region16: #{tpu_custom_call.1} parent=1 // pred_region
      _
    $region17: #{tpu_custom_call.1} parent=1 // pred_fallthru
      _
    // Predicated region
    $region18: #{tpu_custom_call.1} parent=1 // pred_check
      _
    $region19: #{tpu_custom_call.1} parent=1 // pred_check_branch
      %31 = sbr.rel (0) target = $region21
    $region20: #{tpu_custom_call.1} parent=1 // pred_region
      _
    $region21: #{tpu_custom_call.1} parent=1 // pred_fallthru
      _
    // Predicated region
    $region22: #{tpu_custom_call.1} parent=1 // pred_check
      _
    $region23: #{tpu_custom_call.1} parent=1 // pred_check_branch
      %33 = sbr.rel (0) target = $region25
    $region24: #{tpu_custom_call.1} parent=1 // pred_region
      %34 = dma.done [#allocation5], 128
    $region25: #{tpu_custom_call.1} parent=1 // pred_fallthru
      _
    %p36 = scmp.eq.s32.totalorder 0, 0
    // Predicated region
    $region26: #{tpu_custom_call.1} parent=1 // pred_check
      %p37 = pneg %p36
    $region27: #{tpu_custom_call.1} parent=1 // pred_check_branch
      %39 = sbr.rel (%p37) target = $region29
    $region28: #{tpu_custom_call.1} parent=1 // pred_region
      %vm40 = vcmask 523264
      %41 = vst.msk [vmem:[#allocation2] sm:$0xff] %vm40, 0.0
      %42 = vst.msk [vmem:[#allocation2 + $0x8] sm:$0xff] %vm40, 0.0
      %vm43 = vcmask 64512
      %44 = vst.msk [vmem:[#allocation3] sm:$0xff] %vm43, 0.0
      %45 = vst.msk [vmem:[#allocation3 + $0x8] sm:$0xff] %vm43, 0.0
    $region29: #{tpu_custom_call.1} parent=1 // pred_fallthru
      _
    %v46 = vld [vmem:[#allocation4] sm:$0xf]
    %v47 = vld [vmem:[#allocation4 + $0x4] sm:$0xf]
    %v48 = vld [vmem:[#allocation2] sm:$0xff]
    %v49 = vld [vmem:[#allocation2 + $0x8] sm:$0xff]
    %v50 = vld [vmem:[%s1] sm:$0xf]
    %v51 = vld [vmem:[%s1 + $0x4] sm:$0xf]
    %v52 = vld [vmem:[%s1 + $0x8] sm:$0xf]
    %v53 = vld [vmem:[%s1 + $0xc] sm:$0xf]
    %v56 = vunpack.c.l.b16 %v46
    %v57 = vunpack.c.l.b16 %v47
    %v58 = vpack.c.b16 %v57, %v56
    %v63 = vunpack.c.l.b16 %v50
    %v64 = vunpack.c.l.b16 %v51
    %v65 = vunpack.c.l.b16 %v52
    %v66 = vunpack.c.l.b16 %v53
    %v67 = vpack.c.b16 %v64, %v63
    %v68 = vpack.c.b16 %v66, %v65
    %vm71 = vcmask 261120
    %v73 = vsel %vm71, %v58, 0
    %75 = vmatprep.subr.bf16.mxu0 0
    %76 = vmatpush1.bf16.msra.mxu0 %v67
    %77 = vmatprep.subr.bf16.mxu0 0
    %78 = vmatpush1.bf16.msra.mxu0 %v68
    %79 = vmatprep.subr.bf16.mxu0 0
    %80 = vmatpush1.bf16.msra.mxu0 0
    %81 = vmatprep.subr.bf16.mxu0 0
    %82 = vmatpush1.bf16.msra.mxu0 0
    %83 = vmatprep.subr.bf16.mxu0 0
    %84 = vmatpush1.bf16.msra.mxu0 0
    %85 = vmatprep.subr.bf16.mxu0 0
    %86 = vmatpush1.bf16.msra.mxu0 0
    %87 = vmatprep.subr.bf16.mxu0 0
    %88 = vmatpush1.bf16.msra.mxu0 0
    %89 = vmatprep.subr.bf16.mxu0 0
    %90 = vmatpush1.bf16.msra.mxu0 0
    %91 = vmatprep.subr.bf16.mxu0 0
    %92 = vmatpush1.bf16.msra.mxu0 0
    %93 = vmatprep.subr.bf16.mxu0 0
    %94 = vmatpush1.bf16.msra.mxu0 0
    %95 = vmatprep.subr.bf16.mxu0 0
    %96 = vmatpush1.bf16.msra.mxu0 0
    %97 = vmatprep.subr.bf16.mxu0 0
    %98 = vmatpush1.bf16.msra.mxu0 0
    %99 = vmatprep.subr.bf16.mxu0 0
    %100 = vmatpush1.bf16.msra.mxu0 0
    %101 = vmatprep.subr.bf16.mxu0 0
    %102 = vmatpush1.bf16.msra.mxu0 0
    %103 = vmatprep.subr.bf16.mxu0 0
    %104 = vmatpush1.bf16.msra.mxu0 0
    %105 = vmatprep.subr.bf16.mxu0 0
    %106 = vmatpush1.bf16.msra.mxu0 0
    %107 = vmatprep.mubr.bf16.mxu0 0
    %108 = vmatmul.mubr.bf16.gmra.mrb[0].mxu0 %v73
    %v109 = vpop.f32.mrb[0].mxu0
    %v110 = vadd.f32 0.0, %v109
    %v111 = vpop.f32.mrb[0].mxu0
    %v112 = vpop.f32.mrb[0].mxu0
    %v113 = vadd.f32 0.0, %v112
    %v114 = vpop.f32.mrb[0].mxu0
    %115 = vdwg.mxu0
    %v116 = vadd.f32 %v48, %v110
    %v117 = vadd.f32 %v49, %v113
    %vm118 = vcmask 523264
    %119 = vst.msk [vmem:[#allocation2] sm:$0xff] %vm118, %v116
    %120 = vst.msk [vmem:[#allocation2 + $0x8] sm:$0xff] %vm118, %v117
    %v121 = vld [vmem:[#allocation3] sm:$0xff]
    %v122 = vld [vmem:[#allocation3 + $0x8] sm:$0xff]
    %v123 = vld [vmem:[%s3] sm:$0xf]
    %v124 = vld [vmem:[%s3 + $0x4] sm:$0xf]
    %v125 = vld [vmem:[%s3 + $0x8] sm:$0xf]
    %v126 = vld [vmem:[%s3 + $0xc] sm:$0xf]
    %v131 = vunpack.c.l.b16 %v123
    %v132 = vunpack.c.l.b16 %v124
    %v133 = vunpack.c.l.b16 %v125
    %v134 = vunpack.c.l.b16 %v126
    %v135 = vpack.c.b16 %v132, %v131
    %v136 = vpack.c.b16 %v134, %v133
    %139 = vmatprep.subr.bf16.mxu0 0
    %140 = vmatpush1.bf16.msra.mxu0 %v135
    %141 = vmatprep.subr.bf16.mxu0 0
    %142 = vmatpush1.bf16.msra.mxu0 %v136
    %143 = vmatprep.subr.bf16.mxu0 0
    %144 = vmatpush1.bf16.msra.mxu0 0
    %145 = vmatprep.subr.bf16.mxu0 0
    %146 = vmatpush1.bf16.msra.mxu0 0
    %147 = vmatprep.subr.bf16.mxu0 0
    %148 = vmatpush1.bf16.msra.mxu0 0
    %149 = vmatprep.subr.bf16.mxu0 0
    %150 = vmatpush1.bf16.msra.mxu0 0
    %151 = vmatprep.subr.bf16.mxu0 0
    %152 = vmatpush1.bf16.msra.mxu0 0
    %153 = vmatprep.subr.bf16.mxu0 0
    %154 = vmatpush1.bf16.msra.mxu0 0
    %155 = vmatprep.subr.bf16.mxu0 0
    %156 = vmatpush1.bf16.msra.mxu0 0
    %157 = vmatprep.subr.bf16.mxu0 0
    %158 = vmatpush1.bf16.msra.mxu0 0
    %159 = vmatprep.subr.bf16.mxu0 0
    %160 = vmatpush1.bf16.msra.mxu0 0
    %161 = vmatprep.subr.bf16.mxu0 0
    %162 = vmatpush1.bf16.msra.mxu0 0
    %163 = vmatprep.subr.bf16.mxu0 0
    %164 = vmatpush1.bf16.msra.mxu0 0
    %165 = vmatprep.subr.bf16.mxu0 0
    %166 = vmatpush1.bf16.msra.mxu0 0
    %167 = vmatprep.subr.bf16.mxu0 0
    %168 = vmatpush1.bf16.msra.mxu0 0
    %169 = vmatprep.subr.bf16.mxu0 0
    %170 = vmatpush1.bf16.msra.mxu0 0
    %171 = vmatprep.mubr.bf16.mxu0 0
    %172 = vmatmul.mubr.bf16.gmra.mrb[0].mxu0 %v73
    %v173 = vpop.f32.mrb[0].mxu0
    %v174 = vadd.f32 0.0, %v173
    %v175 = vpop.f32.mrb[0].mxu0
    %v176 = vpop.f32.mrb[0].mxu0
    %v177 = vadd.f32 0.0, %v176
    %v178 = vpop.f32.mrb[0].mxu0
    %179 = vdwg.mxu0
    %v180 = vadd.f32 %v121, %v174
    %v181 = vadd.f32 %v122, %v177
    %vm182 = vcmask 64512
    %183 = vst.msk [vmem:[#allocation3] sm:$0xff] %vm182, %v180
    %184 = vst.msk [vmem:[#allocation3 + $0x8] sm:$0xff] %vm182, %v181
    // Predicated region
    $region30: #{tpu_custom_call.1} parent=1 // pred_check
      %p185 = pneg %p36
    $region31: #{tpu_custom_call.1} parent=1 // pred_check_branch
      %187 = sbr.rel (%p185) target = $region33
    $region32: #{tpu_custom_call.1} parent=1 // pred_region
      %v188 = vld [vmem:[#allocation3] sm:$0xff]
      %v189 = vld [vmem:[#allocation3 + $0x8] sm:$0xff]
      %v190 = vmul.f32 %v188, 2.0
      %v191 = vmul.f32 %v189, 2.0
      %v192 = vpack.c.bf16 %v191, %v190
      %v193 = vld [vmem:[%s4] sm:$0xf]
      %v195 = vsel %vm182, %v192, 0
      %vm197 = vcmask 1043456
      %v199 = vsel %vm197, %v193, 0
      %201 = vmatprep.subr.bf16.mxu0 0
      %202 = vmatpush1.bf16.msra.mxu0 %v199
      %203 = vmatprep.subr.bf16.mxu0 0
      %204 = vmatpush1.bf16.msra.mxu0 0
      %205 = vmatprep.subr.bf16.mxu0 0
      %206 = vmatpush1.bf16.msra.mxu0 0
      %207 = vmatprep.subr.bf16.mxu0 0
      %208 = vmatpush1.bf16.msra.mxu0 0
      %209 = vmatprep.subr.bf16.mxu0 0
      %210 = vmatpush1.bf16.msra.mxu0 0
      %211 = vmatprep.subr.bf16.mxu0 0
      %212 = vmatpush1.bf16.msra.mxu0 0
      %213 = vmatprep.subr.bf16.mxu0 0
      %214 = vmatpush1.bf16.msra.mxu0 0
      %215 = vmatprep.subr.bf16.mxu0 0
      %216 = vmatpush1.bf16.msra.mxu0 0
      %217 = vmatprep.subr.bf16.mxu0 0
      %218 = vmatpush1.bf16.msra.mxu0 0
      %219 = vmatprep.subr.bf16.mxu0 0
      %220 = vmatpush1.bf16.msra.mxu0 0
      %221 = vmatprep.subr.bf16.mxu0 0
      %222 = vmatpush1.bf16.msra.mxu0 0
      %223 = vmatprep.subr.bf16.mxu0 0
      %224 = vmatpush1.bf16.msra.mxu0 0
      %225 = vmatprep.subr.bf16.mxu0 0
      %226 = vmatpush1.bf16.msra.mxu0 0
      %227 = vmatprep.subr.bf16.mxu0 0
      %228 = vmatpush1.bf16.msra.mxu0 0
      %229 = vmatprep.subr.bf16.mxu0 0
      %230 = vmatpush1.bf16.msra.mxu0 0
      %231 = vmatprep.subr.bf16.mxu0 0
      %232 = vmatpush1.bf16.msra.mxu0 0
      %233 = vmatprep.mubr.bf16.mxu0 0
      %234 = vmatmul.mubr.bf16.gmra.mrb[0].mxu0 %v195
      %v235 = vpop.f32.mrb[0].mxu0
      %v236 = vadd.f32 0.0, %v235
      %v237 = vpop.f32.mrb[0].mxu0
      %v238 = vpop.f32.mrb[0].mxu0
      %v239 = vadd.f32 0.0, %v238
      %v240 = vpop.f32.mrb[0].mxu0
      %241 = vdwg.mxu0
      %v242 = vld [vmem:[#allocation2] sm:$0xff]
      %v243 = vld [vmem:[#allocation2 + $0x8] sm:$0xff]
      %v244 = vadd.f32 %v242, %v236
      %v245 = vadd.f32 %v243, %v239
      %v246 = vld [vmem:[%s2] sm:$0x1]
      %v248 = vlaneseq
      %v249 = vshrl.u32 %v248, 7
      %v250 = vsub.s32 0, %v249
      %v251 = vrot.slane %v246, %v250
      %v253 = vadd.f32 %v244, %v251
      %v254 = vadd.f32 %v245, %v251
      %255 = vst.msk [vmem:[#allocation7] sm:$0xff] %vm118, %v253
      %256 = vst.msk [vmem:[#allocation7 + $0x8] sm:$0xff] %vm118, %v254
    $region33: #{tpu_custom_call.1} parent=1 // pred_fallthru
      _
    // Predicated region
    $region34: #{tpu_custom_call.1} parent=1 // pred_check
      _
    $region35: #{tpu_custom_call.1} parent=1 // pred_check_branch
      %258 = sbr.rel (0) target = $region37
    $region36: #{tpu_custom_call.1} parent=1 // pred_region
      %s260 = ssub.s32 256, 256
      %261 = vsyncadd [#allocation6], %s260
      %s262 = sshll.u32 [#allocation7], 4
      %s263 = int_to_ptr.vmem [resolvable:$true] %s262
      %268 = dma.vmem_to_hbm [thread:$0]  %s263, 256, %s5, [#allocation6], 128, 128, 8
    $region37: #{tpu_custom_call.1} parent=1 // pred_fallthru
      _
    // Predicated region
    $region38: #{tpu_custom_call.1} parent=1 // pred_check
      _
    $region39: #{tpu_custom_call.1} parent=1 // pred_check_branch
      %270 = sbr.rel (0) target = $region41
    $region40: #{tpu_custom_call.1} parent=1 // pred_region
      %271 = dma.done [#allocation6], 256
    $region41: #{tpu_custom_call.1} parent=1 // pred_fallthru
      _
    %272 = vsyncpa [#allocation5], 1
    %273 = vsyncpa [#allocation6], 1

</llo_original>
